<compile_context>
chip_gen: v5e
topology: v5e:2x2
jax: 0.10.0
libtpu: 0.0.40
codegen_flags: <defaults>
</compile_context>

<pallas_src>
import functools

import jax
import jax.numpy as jnp
from jax.experimental import pallas as pl
from jax.experimental.pallas import tpu as pltpu


DEFAULT_TOKENS_PER_BLOCK = 128          # max tokens gathered per grid step
MAX_TOKENS_PER_CALL = 32768             # bounds the scalar-prefetched rows array in SMEM
RESIDENT_TABLE_LIMIT_BYTES = 16 << 20   # combined-table size below which tables live in VMEM


def _round_up(x, m):
    return ((x + m - 1) // m) * m


def _pick_tokens_per_block(n, requested):
    # Keep at least 2 grid blocks when possible so v7x's two TensorCores both get
    # work under dimension_semantics=("parallel",).  Always a multiple of 8.
    return int(max(8, min(_round_up(requested, 8), _round_up((n + 1) // 2, 8))))


# ---------------------------------------------------------------------------
# Fast path: concatenated table resident in VMEM, per-token in-VMEM row copy.
# ---------------------------------------------------------------------------
def _resident_kernel(rows_ref, tab_ref, out_ref, *, tokens_per_block):
    """rows_ref: SMEM int32 [n_pad]; tab_ref: VMEM [V, D]; out_ref: VMEM [tpb, D]."""
    base = pl.program_id(0) * tokens_per_block
    for t in range(tokens_per_block):
        r = rows_ref[base + t]                      # already clamped + table-resolved
        out_ref[pl.ds(t, 1), :] = tab_ref[pl.ds(r, 1), :]


def _resident_gather(rows, table, tokens_per_block):
    n = rows.shape[0]
    v, d = table.shape
    tpb = _pick_tokens_per_block(n, tokens_per_block)
    n_pad = _round_up(n, tpb)
    nblocks = n_pad // tpb
    rows_pad = jnp.zeros((n_pad,), jnp.int32).at[:n].set(rows)

    table_bytes = v * d * table.dtype.itemsize
    # The table BlockSpec is still double-buffered by the pipeline; leave headroom
    # for the output blocks.  Cap keeps us under v7x's 64 MiB physical VMEM.
    vmem_limit = int(min(48 << 20, max(32 << 20, 2 * table_bytes + (4 << 20))))

    kernel = functools.partial(_resident_kernel, tokens_per_block=tpb)
    out = pl.pallas_call(
        kernel,
        out_shape=jax.ShapeDtypeStruct((n_pad, d), table.dtype),
        grid_spec=pltpu.PrefetchScalarGridSpec(
            num_scalar_prefetch=1,                              # resolved rows -> SMEM
            grid=(nblocks,),
            in_specs=[pl.BlockSpec((v, d), lambda b, rows: (0, 0))],   # table resident
            out_specs=pl.BlockSpec((tpb, d), lambda b, rows: (b, 0)),
        ),
        compiler_params=pltpu.CompilerParams(
            dimension_semantics=("parallel",),
            vmem_limit_bytes=vmem_limit,
        ),
    )(rows_pad, table)
    return out[:n]


# ---------------------------------------------------------------------------
# Large-vocab path: tables stay in HBM, per-token DMA gather straight into out_ref.
# ---------------------------------------------------------------------------
def _hbm_kernel(rows_ref, pre_hbm, ext_hbm, out_ref, sem, *, tokens_per_block):
    """rows_ref: SMEM int32 [n_pad]; pre_hbm/ext_hbm: HBM [*, D]; out_ref: VMEM [tpb, D]."""
    base = pl.program_id(0) * tokens_per_block
    pivot = pre_hbm.shape[0]

    # Issue every row gather for this block first (all in flight concurrently),
    # landing directly in the pipelined output block (no staging buffer).
    for t in range(tokens_per_block):
        r = rows_ref[base + t]                      # global row in [0, pivot + n_extra)
        dst = out_ref.at[pl.ds(t, 1), :]

        @pl.when(r < pivot)
        def _():
            pltpu.make_async_copy(pre_hbm.at[pl.ds(r, 1), :], dst, sem).start()

        @pl.when(r >= pivot)
        def _():
            pltpu.make_async_copy(ext_hbm.at[pl.ds(r - pivot, 1), :], dst, sem).start()

    # Every copy signals the same semaphore and moves an identical [1, D] row
    # (dtype / D equality asserted in the wrapper), so wait once per issued copy
    # with a canonical same-shaped descriptor on the true destination.
    for t in range(tokens_per_block):
        pltpu.make_async_copy(pre_hbm.at[pl.ds(0, 1), :],
                              out_ref.at[pl.ds(t, 1), :], sem).wait()


def _hbm_gather(rows, pre_table, ext_table, tokens_per_block):
    n = rows.shape[0]
    d = pre_table.shape[1]
    tpb = _pick_tokens_per_block(n, tokens_per_block)
    n_pad = _round_up(n, tpb)
    nblocks = n_pad // tpb
    rows_pad = jnp.zeros((n_pad,), jnp.int32).at[:n].set(rows)  # pad -> pretrained row 0

    kernel = functools.partial(_hbm_kernel, tokens_per_block=tpb)
    out = pl.pallas_call(
        kernel,
        out_shape=jax.ShapeDtypeStruct((n_pad, d), pre_table.dtype),
        grid_spec=pltpu.PrefetchScalarGridSpec(
            num_scalar_prefetch=1,                  # resolved rows -> SMEM
            grid=(nblocks,),
            in_specs=[
                pl.BlockSpec(memory_space=pl.ANY),  # pretrained table stays in HBM
                pl.BlockSpec(memory_space=pl.ANY),  # extra table stays in HBM
            ],
            out_specs=pl.BlockSpec((tpb, d), lambda b, rows: (b, 0)),
            scratch_shapes=[pltpu.SemaphoreType.DMA],   # single shared DMA semaphore
        ),
        compiler_params=pltpu.CompilerParams(
            dimension_semantics=("parallel",),      # token blocks are independent
        ),
    )(rows_pad, pre_table, ext_table)
    return out[:n]


# ---------------------------------------------------------------------------
# Public wrapper (routing resolution, path dispatch, SMEM-bounded chunking).
# ---------------------------------------------------------------------------
def combined_embedding(indices, pre_table, ext_table, *,
                       tokens_per_block=DEFAULT_TOKENS_PER_BLOCK,
                       resident_limit_bytes=RESIDENT_TABLE_LIMIT_BYTES,
                       force_hbm_gather=False):
    """indices: [N] int; pre_table: [pivot, D]; ext_table: [n_extra, D] -> [N, D]."""
    pivot, d = pre_table.shape
    n_extra, d2 = ext_table.shape
    assert d == d2, "embedding dims must match"
    assert pre_table.dtype == ext_table.dtype, "table dtypes must match"

    idx = indices.astype(jnp.int32)
    # Collapse the two-table routing into a single clamped, table-resolved row index.
    # (ids >= pivot + n_extra clamp to the last extra row; torch would raise.)
    rows = jnp.where(idx < pivot,
                     jnp.clip(idx, 0, pivot - 1),
                     jnp.clip(idx - pivot, 0, n_extra - 1) + pivot).astype(jnp.int32)

    table_bytes = (pivot + n_extra) * d * pre_table.dtype.itemsize
    use_resident = (table_bytes <= resident_limit_bytes) and not force_hbm_gather
    tab = jnp.concatenate([pre_table, ext_table], axis=0) if use_resident else None

    n = rows.shape[0]
    outs = []
    for start in range(0, n, MAX_TOKENS_PER_CALL):   # bound the SMEM rows footprint
        chunk = rows[start:start + MAX_TOKENS_PER_CALL]
        if use_resident:
            outs.append(_resident_gather(chunk, tab, tokens_per_block))
        else:
            outs.append(_hbm_gather(chunk, pre_table, ext_table, tokens_per_block))
    return outs[0] if len(outs) == 1 else jnp.concatenate(outs, axis=0)


if __name__ == "__main__":
    key = jax.random.PRNGKey(0)
    k_pre, k_ext, k_idx = jax.random.split(key, 3)

    # Small deterministic shapes consistent with the module:
    #   pretrained_embedding: num_embeddings = pivot = 12, dim = 32
    #   embedding:            num_embeddings = 20,          dim = 32
    pivot, n_extra, dim, n_tokens = 12, 20, 32, 100
    pre_table = jax.random.normal(k_pre, (pivot, dim), dtype=jnp.float32)
    ext_table = jax.random.normal(k_ext, (n_extra, dim), dtype=jnp.float32)
    indices = jax.random.randint(k_idx, (n_tokens,), 0, pivot + n_extra,
                                 dtype=jnp.int32)

    # Pure-JAX reference mirroring the torch forward exactly.
    mask_lo = (indices < pivot).astype(jnp.float32)[:, None]
    ref = (pre_table[jnp.clip(indices, 0, pivot - 1)] * mask_lo
           + ext_table[jnp.maximum(indices, pivot) - pivot] * (1.0 - mask_lo))

    # Fast path: tables resident in VMEM.
    out_res = jax.block_until_ready(combined_embedding(indices, pre_table, ext_table))
    assert out_res.shape == (n_tokens, dim)
    assert jnp.allclose(out_res, ref, atol=1e-6), "resident path mismatch vs reference"

    # Large-vocab path: tables stay in HBM, per-row DMA gather straight into the output.
    out_hbm = jax.block_until_ready(
        combined_embedding(indices, pre_table, ext_table, force_hbm_gather=True))
    assert out_hbm.shape == (n_tokens, dim)
    assert jnp.allclose(out_hbm, ref, atol=1e-6), "HBM-gather path mismatch vs reference"

    print("KERNEL_OK")
</pallas_src>

<mosaic_0001>
module attributes {stable_mosaic.version = 11 : i64} {
  func.func @_resident_kernel(%arg0: i32, %arg1: memref<112xi32, #tpu.memory_space<smem>>, %arg2: memref<32x32xf32, #tpu.memory_space<vmem>>, %arg3: memref<56x32xf32, #tpu.memory_space<vmem>>) attributes {dimension_semantics = [#tpu.dimension_semantics<parallel>], iteration_bounds = array<i64: 2>, scalar_prefetch = 1 : i64, scratch_operands = 0 : i64, tpu.core_type = #tpu.core_type<tc>, window_params = [{pipeline_mode = #tpu.pipeline_mode<synchronous>, transform_indices = @transform_0, window_bounds = array<i64: 32, 32>}, {transform_indices = @transform_1, window_bounds = array<i64: 56, 32>}]} {
    %c56_i32 = arith.constant 56 : i32
    %0 = arith.muli %arg0, %c56_i32 : i32
    %c0_i32 = arith.constant 0 : i32
    %1 = arith.addi %0, %c0_i32 : i32
    %2 = arith.index_cast %1 : i32 to index
    %3 = memref.load %arg1[%2] : memref<112xi32, #tpu.memory_space<smem>>
    %4 = arith.index_cast %3 : i32 to index
    %c0 = arith.constant 0 : index
    %5 = vector.load %arg2[%4, %c0] : memref<32x32xf32, #tpu.memory_space<vmem>>, vector<1x32xf32>
    %c0_0 = arith.constant 0 : index
    %c0_1 = arith.constant 0 : index
    %6 = vector.load %arg3[%c0_0, %c0_1] : memref<56x32xf32, #tpu.memory_space<vmem>>, vector<1x32xf32>
    tpu.vector_store %arg3[%c0_0, %c0_1], %5 {strides = array<i32>} : memref<56x32xf32, #tpu.memory_space<vmem>>, vector<1x32xf32>,
    %c1_i32 = arith.constant 1 : i32
    %7 = arith.addi %0, %c1_i32 : i32
    %8 = arith.index_cast %7 : i32 to index
    %9 = memref.load %arg1[%8] : memref<112xi32, #tpu.memory_space<smem>>
    %10 = arith.index_cast %9 : i32 to index
    %c0_2 = arith.constant 0 : index
    %11 = vector.load %arg2[%10, %c0_2] : memref<32x32xf32, #tpu.memory_space<vmem>>, vector<1x32xf32>
    %c1 = arith.constant 1 : index
    %c0_3 = arith.constant 0 : index
    %12 = vector.load %arg3[%c1, %c0_3] : memref<56x32xf32, #tpu.memory_space<vmem>>, vector<1x32xf32>
    tpu.vector_store %arg3[%c1, %c0_3], %11 {strides = array<i32>} : memref<56x32xf32, #tpu.memory_space<vmem>>, vector<1x32xf32>,
    %c2_i32 = arith.constant 2 : i32
    %13 = arith.addi %0, %c2_i32 : i32
    %14 = arith.index_cast %13 : i32 to index
    %15 = memref.load %arg1[%14] : memref<112xi32, #tpu.memory_space<smem>>
    %16 = arith.index_cast %15 : i32 to index
    %c0_4 = arith.constant 0 : index
    %17 = vector.load %arg2[%16, %c0_4] : memref<32x32xf32, #tpu.memory_space<vmem>>, vector<1x32xf32>
    %c2 = arith.constant 2 : index
    %c0_5 = arith.constant 0 : index
    %18 = vector.load %arg3[%c2, %c0_5] : memref<56x32xf32, #tpu.memory_space<vmem>>, vector<1x32xf32>
    tpu.vector_store %arg3[%c2, %c0_5], %17 {strides = array<i32>} : memref<56x32xf32, #tpu.memory_space<vmem>>, vector<1x32xf32>,
    %c3_i32 = arith.constant 3 : i32
    %19 = arith.addi %0, %c3_i32 : i32
    %20 = arith.index_cast %19 : i32 to index
    %21 = memref.load %arg1[%20] : memref<112xi32, #tpu.memory_space<smem>>
    %22 = arith.index_cast %21 : i32 to index
    %c0_6 = arith.constant 0 : index
    %23 = vector.load %arg2[%22, %c0_6] : memref<32x32xf32, #tpu.memory_space<vmem>>, vector<1x32xf32>
    %c3 = arith.constant 3 : index
    %c0_7 = arith.constant 0 : index
    %24 = vector.load %arg3[%c3, %c0_7] : memref<56x32xf32, #tpu.memory_space<vmem>>, vector<1x32xf32>
    tpu.vector_store %arg3[%c3, %c0_7], %23 {strides = array<i32>} : memref<56x32xf32, #tpu.memory_space<vmem>>, vector<1x32xf32>,
    %c4_i32 = arith.constant 4 : i32
    %25 = arith.addi %0, %c4_i32 : i32
    %26 = arith.index_cast %25 : i32 to index
    %27 = memref.load %arg1[%26] : memref<112xi32, #tpu.memory_space<smem>>
    %28 = arith.index_cast %27 : i32 to index
    %c0_8 = arith.constant 0 : index
    %29 = vector.load %arg2[%28, %c0_8] : memref<32x32xf32, #tpu.memory_space<vmem>>, vector<1x32xf32>
    %c4 = arith.constant 4 : index
    %c0_9 = arith.constant 0 : index
    %30 = vector.load %arg3[%c4, %c0_9] : memref<56x32xf32, #tpu.memory_space<vmem>>, vector<1x32xf32>
    tpu.vector_store %arg3[%c4, %c0_9], %29 {strides = array<i32>} : memref<56x32xf32, #tpu.memory_space<vmem>>, vector<1x32xf32>,
    %c5_i32 = arith.constant 5 : i32
    %31 = arith.addi %0, %c5_i32 : i32
    %32 = arith.index_cast %31 : i32 to index
    %33 = memref.load %arg1[%32] : memref<112xi32, #tpu.memory_space<smem>>
    %34 = arith.index_cast %33 : i32 to index
    %c0_10 = arith.constant 0 : index
    %35 = vector.load %arg2[%34, %c0_10] : memref<32x32xf32, #tpu.memory_space<vmem>>, vector<1x32xf32>
    %c5 = arith.constant 5 : index
    %c0_11 = arith.constant 0 : index
    %36 = vector.load %arg3[%c5, %c0_11] : memref<56x32xf32, #tpu.memory_space<vmem>>, vector<1x32xf32>
    tpu.vector_store %arg3[%c5, %c0_11], %35 {strides = array<i32>} : memref<56x32xf32, #tpu.memory_space<vmem>>, vector<1x32xf32>,
    %c6_i32 = arith.constant 6 : i32
    %37 = arith.addi %0, %c6_i32 : i32
    %38 = arith.index_cast %37 : i32 to index
    %39 = memref.load %arg1[%38] : memref<112xi32, #tpu.memory_space<smem>>
    %40 = arith.index_cast %39 : i32 to index
    %c0_12 = arith.constant 0 : index
    %41 = vector.load %arg2[%40, %c0_12] : memref<32x32xf32, #tpu.memory_space<vmem>>, vector<1x32xf32>
    %c6 = arith.constant 6 : index
    %c0_13 = arith.constant 0 : index
    %42 = vector.load %arg3[%c6, %c0_13] : memref<56x32xf32, #tpu.memory_space<vmem>>, vector<1x32xf32>
    tpu.vector_store %arg3[%c6, %c0_13], %41 {strides = array<i32>} : memref<56x32xf32, #tpu.memory_space<vmem>>, vector<1x32xf32>,
    %c7_i32 = arith.constant 7 : i32
    %43 = arith.addi %0, %c7_i32 : i32
    %44 = arith.index_cast %43 : i32 to index
    %45 = memref.load %arg1[%44] : memref<112xi32, #tpu.memory_space<smem>>
    %46 = arith.index_cast %45 : i32 to index
    %c0_14 = arith.constant 0 : index
    %47 = vector.load %arg2[%46, %c0_14] : memref<32x32xf32, #tpu.memory_space<vmem>>, vector<1x32xf32>
    %c7 = arith.constant 7 : index
    %c0_15 = arith.constant 0 : index
    %48 = vector.load %arg3[%c7, %c0_15] : memref<56x32xf32, #tpu.memory_space<vmem>>, vector<1x32xf32>
    tpu.vector_store %arg3[%c7, %c0_15], %47 {strides = array<i32>} : memref<56x32xf32, #tpu.memory_space<vmem>>, vector<1x32xf32>,
    %c8_i32 = arith.constant 8 : i32
    %49 = arith.addi %0, %c8_i32 : i32
    %50 = arith.index_cast %49 : i32 to index
    %51 = memref.load %arg1[%50] : memref<112xi32, #tpu.memory_space<smem>>
    %52 = arith.index_cast %51 : i32 to index
    %c0_16 = arith.constant 0 : index
    %53 = vector.load %arg2[%52, %c0_16] : memref<32x32xf32, #tpu.memory_space<vmem>>, vector<1x32xf32>
    %c8 = arith.constant 8 : index
    %c0_17 = arith.constant 0 : index
    %54 = vector.load %arg3[%c8, %c0_17] : memref<56x32xf32, #tpu.memory_space<vmem>>, vector<1x32xf32>
    tpu.vector_store %arg3[%c8, %c0_17], %53 {strides = array<i32>} : memref<56x32xf32, #tpu.memory_space<vmem>>, vector<1x32xf32>,
    %c9_i32 = arith.constant 9 : i32
    %55 = arith.addi %0, %c9_i32 : i32
    %56 = arith.index_cast %55 : i32 to index
    %57 = memref.load %arg1[%56] : memref<112xi32, #tpu.memory_space<smem>>
    %58 = arith.index_cast %57 : i32 to index
    %c0_18 = arith.constant 0 : index
    %59 = vector.load %arg2[%58, %c0_18] : memref<32x32xf32, #tpu.memory_space<vmem>>, vector<1x32xf32>
    %c9 = arith.constant 9 : index
    %c0_19 = arith.constant 0 : index
    %60 = vector.load %arg3[%c9, %c0_19] : memref<56x32xf32, #tpu.memory_space<vmem>>, vector<1x32xf32>
    tpu.vector_store %arg3[%c9, %c0_19], %59 {strides = array<i32>} : memref<56x32xf32, #tpu.memory_space<vmem>>, vector<1x32xf32>,
    %c10_i32 = arith.constant 10 : i32
    %61 = arith.addi %0, %c10_i32 : i32
    %62 = arith.index_cast %61 : i32 to index
    %63 = memref.load %arg1[%62] : memref<112xi32, #tpu.memory_space<smem>>
    %64 = arith.index_cast %63 : i32 to index
    %c0_20 = arith.constant 0 : index
    %65 = vector.load %arg2[%64, %c0_20] : memref<32x32xf32, #tpu.memory_space<vmem>>, vector<1x32xf32>
    %c10 = arith.constant 10 : index
    %c0_21 = arith.constant 0 : index
    %66 = vector.load %arg3[%c10, %c0_21] : memref<56x32xf32, #tpu.memory_space<vmem>>, vector<1x32xf32>
    tpu.vector_store %arg3[%c10, %c0_21], %65 {strides = array<i32>} : memref<56x32xf32, #tpu.memory_space<vmem>>, vector<1x32xf32>,
    %c11_i32 = arith.constant 11 : i32
    %67 = arith.addi %0, %c11_i32 : i32
    %68 = arith.index_cast %67 : i32 to index
    %69 = memref.load %arg1[%68] : memref<112xi32, #tpu.memory_space<smem>>
    %70 = arith.index_cast %69 : i32 to index
    %c0_22 = arith.constant 0 : index
    %71 = vector.load %arg2[%70, %c0_22] : memref<32x32xf32, #tpu.memory_space<vmem>>, vector<1x32xf32>
    %c11 = arith.constant 11 : index
    %c0_23 = arith.constant 0 : index
    %72 = vector.load %arg3[%c11, %c0_23] : memref<56x32xf32, #tpu.memory_space<vmem>>, vector<1x32xf32>
    tpu.vector_store %arg3[%c11, %c0_23], %71 {strides = array<i32>} : memref<56x32xf32, #tpu.memory_space<vmem>>, vector<1x32xf32>,
    %c12_i32 = arith.constant 12 : i32
    %73 = arith.addi %0, %c12_i32 : i32
    %74 = arith.index_cast %73 : i32 to index
    %75 = memref.load %arg1[%74] : memref<112xi32, #tpu.memory_space<smem>>
    %76 = arith.index_cast %75 : i32 to index
    %c0_24 = arith.constant 0 : index
    %77 = vector.load %arg2[%76, %c0_24] : memref<32x32xf32, #tpu.memory_space<vmem>>, vector<1x32xf32>
    %c12 = arith.constant 12 : index
    %c0_25 = arith.constant 0 : index
    %78 = vector.load %arg3[%c12, %c0_25] : memref<56x32xf32, #tpu.memory_space<vmem>>, vector<1x32xf32>
    tpu.vector_store %arg3[%c12, %c0_25], %77 {strides = array<i32>} : memref<56x32xf32, #tpu.memory_space<vmem>>, vector<1x32xf32>,
    %c13_i32 = arith.constant 13 : i32
    %79 = arith.addi %0, %c13_i32 : i32
    %80 = arith.index_cast %79 : i32 to index
    %81 = memref.load %arg1[%80] : memref<112xi32, #tpu.memory_space<smem>>
    %82 = arith.index_cast %81 : i32 to index
    %c0_26 = arith.constant 0 : index
    %83 = vector.load %arg2[%82, %c0_26] : memref<32x32xf32, #tpu.memory_space<vmem>>, vector<1x32xf32>
    %c13 = arith.constant 13 : index
    %c0_27 = arith.constant 0 : index
    %84 = vector.load %arg3[%c13, %c0_27] : memref<56x32xf32, #tpu.memory_space<vmem>>, vector<1x32xf32>
    tpu.vector_store %arg3[%c13, %c0_27], %83 {strides = array<i32>} : memref<56x32xf32, #tpu.memory_space<vmem>>, vector<1x32xf32>,
    %c14_i32 = arith.constant 14 : i32
    %85 = arith.addi %0, %c14_i32 : i32
    %86 = arith.index_cast %85 : i32 to index
    %87 = memref.load %arg1[%86] : memref<112xi32, #tpu.memory_space<smem>>
    %88 = arith.index_cast %87 : i32 to index
    %c0_28 = arith.constant 0 : index
    %89 = vector.load %arg2[%88, %c0_28] : memref<32x32xf32, #tpu.memory_space<vmem>>, vector<1x32xf32>
    %c14 = arith.constant 14 : index
    %c0_29 = arith.constant 0 : index
    %90 = vector.load %arg3[%c14, %c0_29] : memref<56x32xf32, #tpu.memory_space<vmem>>, vector<1x32xf32>
    tpu.vector_store %arg3[%c14, %c0_29], %89 {strides = array<i32>} : memref<56x32xf32, #tpu.memory_space<vmem>>, vector<1x32xf32>,
    %c15_i32 = arith.constant 15 : i32
    %91 = arith.addi %0, %c15_i32 : i32
    %92 = arith.index_cast %91 : i32 to index
    %93 = memref.load %arg1[%92] : memref<112xi32, #tpu.memory_space<smem>>
    %94 = arith.index_cast %93 : i32 to index
    %c0_30 = arith.constant 0 : index
    %95 = vector.load %arg2[%94, %c0_30] : memref<32x32xf32, #tpu.memory_space<vmem>>, vector<1x32xf32>
    %c15 = arith.constant 15 : index
    %c0_31 = arith.constant 0 : index
    %96 = vector.load %arg3[%c15, %c0_31] : memref<56x32xf32, #tpu.memory_space<vmem>>, vector<1x32xf32>
    tpu.vector_store %arg3[%c15, %c0_31], %95 {strides = array<i32>} : memref<56x32xf32, #tpu.memory_space<vmem>>, vector<1x32xf32>,
    %c16_i32 = arith.constant 16 : i32
    %97 = arith.addi %0, %c16_i32 : i32
    %98 = arith.index_cast %97 : i32 to index
    %99 = memref.load %arg1[%98] : memref<112xi32, #tpu.memory_space<smem>>
    %100 = arith.index_cast %99 : i32 to index
    %c0_32 = arith.constant 0 : index
    %101 = vector.load %arg2[%100, %c0_32] : memref<32x32xf32, #tpu.memory_space<vmem>>, vector<1x32xf32>
    %c16 = arith.constant 16 : index
    %c0_33 = arith.constant 0 : index
    %102 = vector.load %arg3[%c16, %c0_33] : memref<56x32xf32, #tpu.memory_space<vmem>>, vector<1x32xf32>
    tpu.vector_store %arg3[%c16, %c0_33], %101 {strides = array<i32>} : memref<56x32xf32, #tpu.memory_space<vmem>>, vector<1x32xf32>,
    %c17_i32 = arith.constant 17 : i32
    %103 = arith.addi %0, %c17_i32 : i32
    %104 = arith.index_cast %103 : i32 to index
    %105 = memref.load %arg1[%104] : memref<112xi32, #tpu.memory_space<smem>>
    %106 = arith.index_cast %105 : i32 to index
    %c0_34 = arith.constant 0 : index
    %107 = vector.load %arg2[%106, %c0_34] : memref<32x32xf32, #tpu.memory_space<vmem>>, vector<1x32xf32>
    %c17 = arith.constant 17 : index
    %c0_35 = arith.constant 0 : index
    %108 = vector.load %arg3[%c17, %c0_35] : memref<56x32xf32, #tpu.memory_space<vmem>>, vector<1x32xf32>
    tpu.vector_store %arg3[%c17, %c0_35], %107 {strides = array<i32>} : memref<56x32xf32, #tpu.memory_space<vmem>>, vector<1x32xf32>,
    %c18_i32 = arith.constant 18 : i32
    %109 = arith.addi %0, %c18_i32 : i32
    %110 = arith.index_cast %109 : i32 to index
    %111 = memref.load %arg1[%110] : memref<112xi32, #tpu.memory_space<smem>>
    %112 = arith.index_cast %111 : i32 to index
    %c0_36 = arith.constant 0 : index
    %113 = vector.load %arg2[%112, %c0_36] : memref<32x32xf32, #tpu.memory_space<vmem>>, vector<1x32xf32>
    %c18 = arith.constant 18 : index
    %c0_37 = arith.constant 0 : index
    %114 = vector.load %arg3[%c18, %c0_37] : memref<56x32xf32, #tpu.memory_space<vmem>>, vector<1x32xf32>
    tpu.vector_store %arg3[%c18, %c0_37], %113 {strides = array<i32>} : memref<56x32xf32, #tpu.memory_space<vmem>>, vector<1x32xf32>,
    %c19_i32 = arith.constant 19 : i32
    %115 = arith.addi %0, %c19_i32 : i32
    %116 = arith.index_cast %115 : i32 to index
    %117 = memref.load %arg1[%116] : memref<112xi32, #tpu.memory_space<smem>>
    %118 = arith.index_cast %117 : i32 to index
    %c0_38 = arith.constant 0 : index
    %119 = vector.load %arg2[%118, %c0_38] : memref<32x32xf32, #tpu.memory_space<vmem>>, vector<1x32xf32>
    %c19 = arith.constant 19 : index
    %c0_39 = arith.constant 0 : index
    %120 = vector.load %arg3[%c19, %c0_39] : memref<56x32xf32, #tpu.memory_space<vmem>>, vector<1x32xf32>
    tpu.vector_store %arg3[%c19, %c0_39], %119 {strides = array<i32>} : memref<56x32xf32, #tpu.memory_space<vmem>>, vector<1x32xf32>,
    %c20_i32 = arith.constant 20 : i32
    %121 = arith.addi %0, %c20_i32 : i32
    %122 = arith.index_cast %121 : i32 to index
    %123 = memref.load %arg1[%122] : memref<112xi32, #tpu.memory_space<smem>>
    %124 = arith.index_cast %123 : i32 to index
    %c0_40 = arith.constant 0 : index
    %125 = vector.load %arg2[%124, %c0_40] : memref<32x32xf32, #tpu.memory_space<vmem>>, vector<1x32xf32>
    %c20 = arith.constant 20 : index
    %c0_41 = arith.constant 0 : index
    %126 = vector.load %arg3[%c20, %c0_41] : memref<56x32xf32, #tpu.memory_space<vmem>>, vector<1x32xf32>
    tpu.vector_store %arg3[%c20, %c0_41], %125 {strides = array<i32>} : memref<56x32xf32, #tpu.memory_space<vmem>>, vector<1x32xf32>,
    %c21_i32 = arith.constant 21 : i32
    %127 = arith.addi %0, %c21_i32 : i32
    %128 = arith.index_cast %127 : i32 to index
    %129 = memref.load %arg1[%128] : memref<112xi32, #tpu.memory_space<smem>>
    %130 = arith.index_cast %129 : i32 to index
    %c0_42 = arith.constant 0 : index
    %131 = vector.load %arg2[%130, %c0_42] : memref<32x32xf32, #tpu.memory_space<vmem>>, vector<1x32xf32>
    %c21 = arith.constant 21 : index
    %c0_43 = arith.constant 0 : index
    %132 = vector.load %arg3[%c21, %c0_43] : memref<56x32xf32, #tpu.memory_space<vmem>>, vector<1x32xf32>
    tpu.vector_store %arg3[%c21, %c0_43], %131 {strides = array<i32>} : memref<56x32xf32, #tpu.memory_space<vmem>>, vector<1x32xf32>,
    %c22_i32 = arith.constant 22 : i32
    %133 = arith.addi %0, %c22_i32 : i32
    %134 = arith.index_cast %133 : i32 to index
    %135 = memref.load %arg1[%134] : memref<112xi32, #tpu.memory_space<smem>>
    %136 = arith.index_cast %135 : i32 to index
    %c0_44 = arith.constant 0 : index
    %137 = vector.load %arg2[%136, %c0_44] : memref<32x32xf32, #tpu.memory_space<vmem>>, vector<1x32xf32>
    %c22 = arith.constant 22 : index
    %c0_45 = arith.constant 0 : index
    %138 = vector.load %arg3[%c22, %c0_45] : memref<56x32xf32, #tpu.memory_space<vmem>>, vector<1x32xf32>
    tpu.vector_store %arg3[%c22, %c0_45], %137 {strides = array<i32>} : memref<56x32xf32, #tpu.memory_space<vmem>>, vector<1x32xf32>,
    %c23_i32 = arith.constant 23 : i32
    %139 = arith.addi %0, %c23_i32 : i32
    %140 = arith.index_cast %139 : i32 to index
    %141 = memref.load %arg1[%140] : memref<112xi32, #tpu.memory_space<smem>>
    %142 = arith.index_cast %141 : i32 to index
    %c0_46 = arith.constant 0 : index
    %143 = vector.load %arg2[%142, %c0_46] : memref<32x32xf32, #tpu.memory_space<vmem>>, vector<1x32xf32>
    %c23 = arith.constant 23 : index
    %c0_47 = arith.constant 0 : index
    %144 = vector.load %arg3[%c23, %c0_47] : memref<56x32xf32, #tpu.memory_space<vmem>>, vector<1x32xf32>
    tpu.vector_store %arg3[%c23, %c0_47], %143 {strides = array<i32>} : memref<56x32xf32, #tpu.memory_space<vmem>>, vector<1x32xf32>,
    %c24_i32 = arith.constant 24 : i32
    %145 = arith.addi %0, %c24_i32 : i32
    %146 = arith.index_cast %145 : i32 to index
    %147 = memref.load %arg1[%146] : memref<112xi32, #tpu.memory_space<smem>>
    %148 = arith.index_cast %147 : i32 to index
    %c0_48 = arith.constant 0 : index
    %149 = vector.load %arg2[%148, %c0_48] : memref<32x32xf32, #tpu.memory_space<vmem>>, vector<1x32xf32>
    %c24 = arith.constant 24 : index
    %c0_49 = arith.constant 0 : index
    %150 = vector.load %arg3[%c24, %c0_49] : memref<56x32xf32, #tpu.memory_space<vmem>>, vector<1x32xf32>
    tpu.vector_store %arg3[%c24, %c0_49], %149 {strides = array<i32>} : memref<56x32xf32, #tpu.memory_space<vmem>>, vector<1x32xf32>,
    %c25_i32 = arith.constant 25 : i32
    %151 = arith.addi %0, %c25_i32 : i32
    %152 = arith.index_cast %151 : i32 to index
    %153 = memref.load %arg1[%152] : memref<112xi32, #tpu.memory_space<smem>>
    %154 = arith.index_cast %153 : i32 to index
    %c0_50 = arith.constant 0 : index
    %155 = vector.load %arg2[%154, %c0_50] : memref<32x32xf32, #tpu.memory_space<vmem>>, vector<1x32xf32>
    %c25 = arith.constant 25 : index
    %c0_51 = arith.constant 0 : index
    %156 = vector.load %arg3[%c25, %c0_51] : memref<56x32xf32, #tpu.memory_space<vmem>>, vector<1x32xf32>
    tpu.vector_store %arg3[%c25, %c0_51], %155 {strides = array<i32>} : memref<56x32xf32, #tpu.memory_space<vmem>>, vector<1x32xf32>,
    %c26_i32 = arith.constant 26 : i32
    %157 = arith.addi %0, %c26_i32 : i32
    %158 = arith.index_cast %157 : i32 to index
    %159 = memref.load %arg1[%158] : memref<112xi32, #tpu.memory_space<smem>>
    %160 = arith.index_cast %159 : i32 to index
    %c0_52 = arith.constant 0 : index
    %161 = vector.load %arg2[%160, %c0_52] : memref<32x32xf32, #tpu.memory_space<vmem>>, vector<1x32xf32>
    %c26 = arith.constant 26 : index
    %c0_53 = arith.constant 0 : index
    %162 = vector.load %arg3[%c26, %c0_53] : memref<56x32xf32, #tpu.memory_space<vmem>>, vector<1x32xf32>
    tpu.vector_store %arg3[%c26, %c0_53], %161 {strides = array<i32>} : memref<56x32xf32, #tpu.memory_space<vmem>>, vector<1x32xf32>,
    %c27_i32 = arith.constant 27 : i32
    %163 = arith.addi %0, %c27_i32 : i32
    %164 = arith.index_cast %163 : i32 to index
    %165 = memref.load %arg1[%164] : memref<112xi32, #tpu.memory_space<smem>>
    %166 = arith.index_cast %165 : i32 to index
    %c0_54 = arith.constant 0 : index
    %167 = vector.load %arg2[%166, %c0_54] : memref<32x32xf32, #tpu.memory_space<vmem>>, vector<1x32xf32>
    %c27 = arith.constant 27 : index
    %c0_55 = arith.constant 0 : index
    %168 = vector.load %arg3[%c27, %c0_55] : memref<56x32xf32, #tpu.memory_space<vmem>>, vector<1x32xf32>
    tpu.vector_store %arg3[%c27, %c0_55], %167 {strides = array<i32>} : memref<56x32xf32, #tpu.memory_space<vmem>>, vector<1x32xf32>,
    %c28_i32 = arith.constant 28 : i32
    %169 = arith.addi %0, %c28_i32 : i32
    %170 = arith.index_cast %169 : i32 to index
    %171 = memref.load %arg1[%170] : memref<112xi32, #tpu.memory_space<smem>>
    %172 = arith.index_cast %171 : i32 to index
    %c0_56 = arith.constant 0 : index
    %173 = vector.load %arg2[%172, %c0_56] : memref<32x32xf32, #tpu.memory_space<vmem>>, vector<1x32xf32>
    %c28 = arith.constant 28 : index
    %c0_57 = arith.constant 0 : index
    %174 = vector.load %arg3[%c28, %c0_57] : memref<56x32xf32, #tpu.memory_space<vmem>>, vector<1x32xf32>
    tpu.vector_store %arg3[%c28, %c0_57], %173 {strides = array<i32>} : memref<56x32xf32, #tpu.memory_space<vmem>>, vector<1x32xf32>,
    %c29_i32 = arith.constant 29 : i32
    %175 = arith.addi %0, %c29_i32 : i32
    %176 = arith.index_cast %175 : i32 to index
    %177 = memref.load %arg1[%176] : memref<112xi32, #tpu.memory_space<smem>>
    %178 = arith.index_cast %177 : i32 to index
    %c0_58 = arith.constant 0 : index
    %179 = vector.load %arg2[%178, %c0_58] : memref<32x32xf32, #tpu.memory_space<vmem>>, vector<1x32xf32>
    %c29 = arith.constant 29 : index
    %c0_59 = arith.constant 0 : index
    %180 = vector.load %arg3[%c29, %c0_59] : memref<56x32xf32, #tpu.memory_space<vmem>>, vector<1x32xf32>
    tpu.vector_store %arg3[%c29, %c0_59], %179 {strides = array<i32>} : memref<56x32xf32, #tpu.memory_space<vmem>>, vector<1x32xf32>,
    %c30_i32 = arith.constant 30 : i32
    %181 = arith.addi %0, %c30_i32 : i32
    %182 = arith.index_cast %181 : i32 to index
    %183 = memref.load %arg1[%182] : memref<112xi32, #tpu.memory_space<smem>>
    %184 = arith.index_cast %183 : i32 to index
    %c0_60 = arith.constant 0 : index
    %185 = vector.load %arg2[%184, %c0_60] : memref<32x32xf32, #tpu.memory_space<vmem>>, vector<1x32xf32>
    %c30 = arith.constant 30 : index
    %c0_61 = arith.constant 0 : index
    %186 = vector.load %arg3[%c30, %c0_61] : memref<56x32xf32, #tpu.memory_space<vmem>>, vector<1x32xf32>
    tpu.vector_store %arg3[%c30, %c0_61], %185 {strides = array<i32>} : memref<56x32xf32, #tpu.memory_space<vmem>>, vector<1x32xf32>,
    %c31_i32 = arith.constant 31 : i32
    %187 = arith.addi %0, %c31_i32 : i32
    %188 = arith.index_cast %187 : i32 to index
    %189 = memref.load %arg1[%188] : memref<112xi32, #tpu.memory_space<smem>>
    %190 = arith.index_cast %189 : i32 to index
    %c0_62 = arith.constant 0 : index
    %191 = vector.load %arg2[%190, %c0_62] : memref<32x32xf32, #tpu.memory_space<vmem>>, vector<1x32xf32>
    %c31 = arith.constant 31 : index
    %c0_63 = arith.constant 0 : index
    %192 = vector.load %arg3[%c31, %c0_63] : memref<56x32xf32, #tpu.memory_space<vmem>>, vector<1x32xf32>
    tpu.vector_store %arg3[%c31, %c0_63], %191 {strides = array<i32>} : memref<56x32xf32, #tpu.memory_space<vmem>>, vector<1x32xf32>,
    %c32_i32 = arith.constant 32 : i32
    %193 = arith.addi %0, %c32_i32 : i32
    %194 = arith.index_cast %193 : i32 to index
    %195 = memref.load %arg1[%194] : memref<112xi32, #tpu.memory_space<smem>>
    %196 = arith.index_cast %195 : i32 to index
    %c0_64 = arith.constant 0 : index
    %197 = vector.load %arg2[%196, %c0_64] : memref<32x32xf32, #tpu.memory_space<vmem>>, vector<1x32xf32>
    %c32 = arith.constant 32 : index
    %c0_65 = arith.constant 0 : index
    %198 = vector.load %arg3[%c32, %c0_65] : memref<56x32xf32, #tpu.memory_space<vmem>>, vector<1x32xf32>
    tpu.vector_store %arg3[%c32, %c0_65], %197 {strides = array<i32>} : memref<56x32xf32, #tpu.memory_space<vmem>>, vector<1x32xf32>,
    %c33_i32 = arith.constant 33 : i32
    %199 = arith.addi %0, %c33_i32 : i32
    %200 = arith.index_cast %199 : i32 to index
    %201 = memref.load %arg1[%200] : memref<112xi32, #tpu.memory_space<smem>>
    %202 = arith.index_cast %201 : i32 to index
    %c0_66 = arith.constant 0 : index
    %203 = vector.load %arg2[%202, %c0_66] : memref<32x32xf32, #tpu.memory_space<vmem>>, vector<1x32xf32>
    %c33 = arith.constant 33 : index
    %c0_67 = arith.constant 0 : index
    %204 = vector.load %arg3[%c33, %c0_67] : memref<56x32xf32, #tpu.memory_space<vmem>>, vector<1x32xf32>
    tpu.vector_store %arg3[%c33, %c0_67], %203 {strides = array<i32>} : memref<56x32xf32, #tpu.memory_space<vmem>>, vector<1x32xf32>,
    %c34_i32 = arith.constant 34 : i32
    %205 = arith.addi %0, %c34_i32 : i32
    %206 = arith.index_cast %205 : i32 to index
    %207 = memref.load %arg1[%206] : memref<112xi32, #tpu.memory_space<smem>>
    %208 = arith.index_cast %207 : i32 to index
    %c0_68 = arith.constant 0 : index
    %209 = vector.load %arg2[%208, %c0_68] : memref<32x32xf32, #tpu.memory_space<vmem>>, vector<1x32xf32>
    %c34 = arith.constant 34 : index
    %c0_69 = arith.constant 0 : index
    %210 = vector.load %arg3[%c34, %c0_69] : memref<56x32xf32, #tpu.memory_space<vmem>>, vector<1x32xf32>
    tpu.vector_store %arg3[%c34, %c0_69], %209 {strides = array<i32>} : memref<56x32xf32, #tpu.memory_space<vmem>>, vector<1x32xf32>,
    %c35_i32 = arith.constant 35 : i32
    %211 = arith.addi %0, %c35_i32 : i32
    %212 = arith.index_cast %211 : i32 to index
    %213 = memref.load %arg1[%212] : memref<112xi32, #tpu.memory_space<smem>>
    %214 = arith.index_cast %213 : i32 to index
    %c0_70 = arith.constant 0 : index
    %215 = vector.load %arg2[%214, %c0_70] : memref<32x32xf32, #tpu.memory_space<vmem>>, vector<1x32xf32>
    %c35 = arith.constant 35 : index
    %c0_71 = arith.constant 0 : index
    %216 = vector.load %arg3[%c35, %c0_71] : memref<56x32xf32, #tpu.memory_space<vmem>>, vector<1x32xf32>
    tpu.vector_store %arg3[%c35, %c0_71], %215 {strides = array<i32>} : memref<56x32xf32, #tpu.memory_space<vmem>>, vector<1x32xf32>,
    %c36_i32 = arith.constant 36 : i32
    %217 = arith.addi %0, %c36_i32 : i32
    %218 = arith.index_cast %217 : i32 to index
    %219 = memref.load %arg1[%218] : memref<112xi32, #tpu.memory_space<smem>>
    %220 = arith.index_cast %219 : i32 to index
    %c0_72 = arith.constant 0 : index
    %221 = vector.load %arg2[%220, %c0_72] : memref<32x32xf32, #tpu.memory_space<vmem>>, vector<1x32xf32>
    %c36 = arith.constant 36 : index
    %c0_73 = arith.constant 0 : index
    %222 = vector.load %arg3[%c36, %c0_73] : memref<56x32xf32, #tpu.memory_space<vmem>>, vector<1x32xf32>
    tpu.vector_store %arg3[%c36, %c0_73], %221 {strides = array<i32>} : memref<56x32xf32, #tpu.memory_space<vmem>>, vector<1x32xf32>,
    %c37_i32 = arith.constant 37 : i32
    %223 = arith.addi %0, %c37_i32 : i32
    %224 = arith.index_cast %223 : i32 to index
    %225 = memref.load %arg1[%224] : memref<112xi32, #tpu.memory_space<smem>>
    %226 = arith.index_cast %225 : i32 to index
    %c0_74 = arith.constant 0 : index
    %227 = vector.load %arg2[%226, %c0_74] : memref<32x32xf32, #tpu.memory_space<vmem>>, vector<1x32xf32>
    %c37 = arith.constant 37 : index
    %c0_75 = arith.constant 0 : index
    %228 = vector.load %arg3[%c37, %c0_75] : memref<56x32xf32, #tpu.memory_space<vmem>>, vector<1x32xf32>
    tpu.vector_store %arg3[%c37, %c0_75], %227 {strides = array<i32>} : memref<56x32xf32, #tpu.memory_space<vmem>>, vector<1x32xf32>,
    %c38_i32 = arith.constant 38 : i32
    %229 = arith.addi %0, %c38_i32 : i32
    %230 = arith.index_cast %229 : i32 to index
    %231 = memref.load %arg1[%230] : memref<112xi32, #tpu.memory_space<smem>>
    %232 = arith.index_cast %231 : i32 to index
    %c0_76 = arith.constant 0 : index
    %233 = vector.load %arg2[%232, %c0_76] : memref<32x32xf32, #tpu.memory_space<vmem>>, vector<1x32xf32>
    %c38 = arith.constant 38 : index
    %c0_77 = arith.constant 0 : index
    %234 = vector.load %arg3[%c38, %c0_77] : memref<56x32xf32, #tpu.memory_space<vmem>>, vector<1x32xf32>
    tpu.vector_store %arg3[%c38, %c0_77], %233 {strides = array<i32>} : memref<56x32xf32, #tpu.memory_space<vmem>>, vector<1x32xf32>,
    %c39_i32 = arith.constant 39 : i32
    %235 = arith.addi %0, %c39_i32 : i32
    %236 = arith.index_cast %235 : i32 to index
    %237 = memref.load %arg1[%236] : memref<112xi32, #tpu.memory_space<smem>>
    %238 = arith.index_cast %237 : i32 to index
    %c0_78 = arith.constant 0 : index
    %239 = vector.load %arg2[%238, %c0_78] : memref<32x32xf32, #tpu.memory_space<vmem>>, vector<1x32xf32>
    %c39 = arith.constant 39 : index
    %c0_79 = arith.constant 0 : index
    %240 = vector.load %arg3[%c39, %c0_79] : memref<56x32xf32, #tpu.memory_space<vmem>>, vector<1x32xf32>
    tpu.vector_store %arg3[%c39, %c0_79], %239 {strides = array<i32>} : memref<56x32xf32, #tpu.memory_space<vmem>>, vector<1x32xf32>,
    %c40_i32 = arith.constant 40 : i32
    %241 = arith.addi %0, %c40_i32 : i32
    %242 = arith.index_cast %241 : i32 to index
    %243 = memref.load %arg1[%242] : memref<112xi32, #tpu.memory_space<smem>>
    %244 = arith.index_cast %243 : i32 to index
    %c0_80 = arith.constant 0 : index
    %245 = vector.load %arg2[%244, %c0_80] : memref<32x32xf32, #tpu.memory_space<vmem>>, vector<1x32xf32>
    %c40 = arith.constant 40 : index
    %c0_81 = arith.constant 0 : index
    %246 = vector.load %arg3[%c40, %c0_81] : memref<56x32xf32, #tpu.memory_space<vmem>>, vector<1x32xf32>
    tpu.vector_store %arg3[%c40, %c0_81], %245 {strides = array<i32>} : memref<56x32xf32, #tpu.memory_space<vmem>>, vector<1x32xf32>,
    %c41_i32 = arith.constant 41 : i32
    %247 = arith.addi %0, %c41_i32 : i32
    %248 = arith.index_cast %247 : i32 to index
    %249 = memref.load %arg1[%248] : memref<112xi32, #tpu.memory_space<smem>>
    %250 = arith.index_cast %249 : i32 to index
    %c0_82 = arith.constant 0 : index
    %251 = vector.load %arg2[%250, %c0_82] : memref<32x32xf32, #tpu.memory_space<vmem>>, vector<1x32xf32>
    %c41 = arith.constant 41 : index
    %c0_83 = arith.constant 0 : index
    %252 = vector.load %arg3[%c41, %c0_83] : memref<56x32xf32, #tpu.memory_space<vmem>>, vector<1x32xf32>
    tpu.vector_store %arg3[%c41, %c0_83], %251 {strides = array<i32>} : memref<56x32xf32, #tpu.memory_space<vmem>>, vector<1x32xf32>,
    %c42_i32 = arith.constant 42 : i32
    %253 = arith.addi %0, %c42_i32 : i32
    %254 = arith.index_cast %253 : i32 to index
    %255 = memref.load %arg1[%254] : memref<112xi32, #tpu.memory_space<smem>>
    %256 = arith.index_cast %255 : i32 to index
    %c0_84 = arith.constant 0 : index
    %257 = vector.load %arg2[%256, %c0_84] : memref<32x32xf32, #tpu.memory_space<vmem>>, vector<1x32xf32>
    %c42 = arith.constant 42 : index
    %c0_85 = arith.constant 0 : index
    %258 = vector.load %arg3[%c42, %c0_85] : memref<56x32xf32, #tpu.memory_space<vmem>>, vector<1x32xf32>
    tpu.vector_store %arg3[%c42, %c0_85], %257 {strides = array<i32>} : memref<56x32xf32, #tpu.memory_space<vmem>>, vector<1x32xf32>,
    %c43_i32 = arith.constant 43 : i32
    %259 = arith.addi %0, %c43_i32 : i32
    %260 = arith.index_cast %259 : i32 to index
    %261 = memref.load %arg1[%260] : memref<112xi32, #tpu.memory_space<smem>>
    %262 = arith.index_cast %261 : i32 to index
    %c0_86 = arith.constant 0 : index
    %263 = vector.load %arg2[%262, %c0_86] : memref<32x32xf32, #tpu.memory_space<vmem>>, vector<1x32xf32>
    %c43 = arith.constant 43 : index
    %c0_87 = arith.constant 0 : index
    %264 = vector.load %arg3[%c43, %c0_87] : memref<56x32xf32, #tpu.memory_space<vmem>>, vector<1x32xf32>
    tpu.vector_store %arg3[%c43, %c0_87], %263 {strides = array<i32>} : memref<56x32xf32, #tpu.memory_space<vmem>>, vector<1x32xf32>,
    %c44_i32 = arith.constant 44 : i32
    %265 = arith.addi %0, %c44_i32 : i32
    %266 = arith.index_cast %265 : i32 to index
    %267 = memref.load %arg1[%266] : memref<112xi32, #tpu.memory_space<smem>>
    %268 = arith.index_cast %267 : i32 to index
    %c0_88 = arith.constant 0 : index
    %269 = vector.load %arg2[%268, %c0_88] : memref<32x32xf32, #tpu.memory_space<vmem>>, vector<1x32xf32>
    %c44 = arith.constant 44 : index
    %c0_89 = arith.constant 0 : index
    %270 = vector.load %arg3[%c44, %c0_89] : memref<56x32xf32, #tpu.memory_space<vmem>>, vector<1x32xf32>
    tpu.vector_store %arg3[%c44, %c0_89], %269 {strides = array<i32>} : memref<56x32xf32, #tpu.memory_space<vmem>>, vector<1x32xf32>,
    %c45_i32 = arith.constant 45 : i32
    %271 = arith.addi %0, %c45_i32 : i32
    %272 = arith.index_cast %271 : i32 to index
    %273 = memref.load %arg1[%272] : memref<112xi32, #tpu.memory_space<smem>>
    %274 = arith.index_cast %273 : i32 to index
    %c0_90 = arith.constant 0 : index
    %275 = vector.load %arg2[%274, %c0_90] : memref<32x32xf32, #tpu.memory_space<vmem>>, vector<1x32xf32>
    %c45 = arith.constant 45 : index
    %c0_91 = arith.constant 0 : index
    %276 = vector.load %arg3[%c45, %c0_91] : memref<56x32xf32, #tpu.memory_space<vmem>>, vector<1x32xf32>
    tpu.vector_store %arg3[%c45, %c0_91], %275 {strides = array<i32>} : memref<56x32xf32, #tpu.memory_space<vmem>>, vector<1x32xf32>,
    %c46_i32 = arith.constant 46 : i32
    %277 = arith.addi %0, %c46_i32 : i32
    %278 = arith.index_cast %277 : i32 to index
    %279 = memref.load %arg1[%278] : memref<112xi32, #tpu.memory_space<smem>>
    %280 = arith.index_cast %279 : i32 to index
    %c0_92 = arith.constant 0 : index
    %281 = vector.load %arg2[%280, %c0_92] : memref<32x32xf32, #tpu.memory_space<vmem>>, vector<1x32xf32>
    %c46 = arith.constant 46 : index
    %c0_93 = arith.constant 0 : index
    %282 = vector.load %arg3[%c46, %c0_93] : memref<56x32xf32, #tpu.memory_space<vmem>>, vector<1x32xf32>
    tpu.vector_store %arg3[%c46, %c0_93], %281 {strides = array<i32>} : memref<56x32xf32, #tpu.memory_space<vmem>>, vector<1x32xf32>,
    %c47_i32 = arith.constant 47 : i32
    %283 = arith.addi %0, %c47_i32 : i32
    %284 = arith.index_cast %283 : i32 to index
    %285 = memref.load %arg1[%284] : memref<112xi32, #tpu.memory_space<smem>>
    %286 = arith.index_cast %285 : i32 to index
    %c0_94 = arith.constant 0 : index
    %287 = vector.load %arg2[%286, %c0_94] : memref<32x32xf32, #tpu.memory_space<vmem>>, vector<1x32xf32>
    %c47 = arith.constant 47 : index
    %c0_95 = arith.constant 0 : index
    %288 = vector.load %arg3[%c47, %c0_95] : memref<56x32xf32, #tpu.memory_space<vmem>>, vector<1x32xf32>
    tpu.vector_store %arg3[%c47, %c0_95], %287 {strides = array<i32>} : memref<56x32xf32, #tpu.memory_space<vmem>>, vector<1x32xf32>,
    %c48_i32 = arith.constant 48 : i32
    %289 = arith.addi %0, %c48_i32 : i32
    %290 = arith.index_cast %289 : i32 to index
    %291 = memref.load %arg1[%290] : memref<112xi32, #tpu.memory_space<smem>>
    %292 = arith.index_cast %291 : i32 to index
    %c0_96 = arith.constant 0 : index
    %293 = vector.load %arg2[%292, %c0_96] : memref<32x32xf32, #tpu.memory_space<vmem>>, vector<1x32xf32>
    %c48 = arith.constant 48 : index
    %c0_97 = arith.constant 0 : index
    %294 = vector.load %arg3[%c48, %c0_97] : memref<56x32xf32, #tpu.memory_space<vmem>>, vector<1x32xf32>
    tpu.vector_store %arg3[%c48, %c0_97], %293 {strides = array<i32>} : memref<56x32xf32, #tpu.memory_space<vmem>>, vector<1x32xf32>,
    %c49_i32 = arith.constant 49 : i32
    %295 = arith.addi %0, %c49_i32 : i32
    %296 = arith.index_cast %295 : i32 to index
    %297 = memref.load %arg1[%296] : memref<112xi32, #tpu.memory_space<smem>>
    %298 = arith.index_cast %297 : i32 to index
    %c0_98 = arith.constant 0 : index
    %299 = vector.load %arg2[%298, %c0_98] : memref<32x32xf32, #tpu.memory_space<vmem>>, vector<1x32xf32>
    %c49 = arith.constant 49 : index
    %c0_99 = arith.constant 0 : index
    %300 = vector.load %arg3[%c49, %c0_99] : memref<56x32xf32, #tpu.memory_space<vmem>>, vector<1x32xf32>
    tpu.vector_store %arg3[%c49, %c0_99], %299 {strides = array<i32>} : memref<56x32xf32, #tpu.memory_space<vmem>>, vector<1x32xf32>,
    %c50_i32 = arith.constant 50 : i32
    %301 = arith.addi %0, %c50_i32 : i32
    %302 = arith.index_cast %301 : i32 to index
    %303 = memref.load %arg1[%302] : memref<112xi32, #tpu.memory_space<smem>>
    %304 = arith.index_cast %303 : i32 to index
    %c0_100 = arith.constant 0 : index
    %305 = vector.load %arg2[%304, %c0_100] : memref<32x32xf32, #tpu.memory_space<vmem>>, vector<1x32xf32>
    %c50 = arith.constant 50 : index
    %c0_101 = arith.constant 0 : index
    %306 = vector.load %arg3[%c50, %c0_101] : memref<56x32xf32, #tpu.memory_space<vmem>>, vector<1x32xf32>
    tpu.vector_store %arg3[%c50, %c0_101], %305 {strides = array<i32>} : memref<56x32xf32, #tpu.memory_space<vmem>>, vector<1x32xf32>,
    %c51_i32 = arith.constant 51 : i32
    %307 = arith.addi %0, %c51_i32 : i32
    %308 = arith.index_cast %307 : i32 to index
    %309 = memref.load %arg1[%308] : memref<112xi32, #tpu.memory_space<smem>>
    %310 = arith.index_cast %309 : i32 to index
    %c0_102 = arith.constant 0 : index
    %311 = vector.load %arg2[%310, %c0_102] : memref<32x32xf32, #tpu.memory_space<vmem>>, vector<1x32xf32>
    %c51 = arith.constant 51 : index
    %c0_103 = arith.constant 0 : index
    %312 = vector.load %arg3[%c51, %c0_103] : memref<56x32xf32, #tpu.memory_space<vmem>>, vector<1x32xf32>
    tpu.vector_store %arg3[%c51, %c0_103], %311 {strides = array<i32>} : memref<56x32xf32, #tpu.memory_space<vmem>>, vector<1x32xf32>,
    %c52_i32 = arith.constant 52 : i32
    %313 = arith.addi %0, %c52_i32 : i32
    %314 = arith.index_cast %313 : i32 to index
    %315 = memref.load %arg1[%314] : memref<112xi32, #tpu.memory_space<smem>>
    %316 = arith.index_cast %315 : i32 to index
    %c0_104 = arith.constant 0 : index
    %317 = vector.load %arg2[%316, %c0_104] : memref<32x32xf32, #tpu.memory_space<vmem>>, vector<1x32xf32>
    %c52 = arith.constant 52 : index
    %c0_105 = arith.constant 0 : index
    %318 = vector.load %arg3[%c52, %c0_105] : memref<56x32xf32, #tpu.memory_space<vmem>>, vector<1x32xf32>
    tpu.vector_store %arg3[%c52, %c0_105], %317 {strides = array<i32>} : memref<56x32xf32, #tpu.memory_space<vmem>>, vector<1x32xf32>,
    %c53_i32 = arith.constant 53 : i32
    %319 = arith.addi %0, %c53_i32 : i32
    %320 = arith.index_cast %319 : i32 to index
    %321 = memref.load %arg1[%320] : memref<112xi32, #tpu.memory_space<smem>>
    %322 = arith.index_cast %321 : i32 to index
    %c0_106 = arith.constant 0 : index
    %323 = vector.load %arg2[%322, %c0_106] : memref<32x32xf32, #tpu.memory_space<vmem>>, vector<1x32xf32>
    %c53 = arith.constant 53 : index
    %c0_107 = arith.constant 0 : index
    %324 = vector.load %arg3[%c53, %c0_107] : memref<56x32xf32, #tpu.memory_space<vmem>>, vector<1x32xf32>
    tpu.vector_store %arg3[%c53, %c0_107], %323 {strides = array<i32>} : memref<56x32xf32, #tpu.memory_space<vmem>>, vector<1x32xf32>,
    %c54_i32 = arith.constant 54 : i32
    %325 = arith.addi %0, %c54_i32 : i32
    %326 = arith.index_cast %325 : i32 to index
    %327 = memref.load %arg1[%326] : memref<112xi32, #tpu.memory_space<smem>>
    %328 = arith.index_cast %327 : i32 to index
    %c0_108 = arith.constant 0 : index
    %329 = vector.load %arg2[%328, %c0_108] : memref<32x32xf32, #tpu.memory_space<vmem>>, vector<1x32xf32>
    %c54 = arith.constant 54 : index
    %c0_109 = arith.constant 0 : index
    %330 = vector.load %arg3[%c54, %c0_109] : memref<56x32xf32, #tpu.memory_space<vmem>>, vector<1x32xf32>
    tpu.vector_store %arg3[%c54, %c0_109], %329 {strides = array<i32>} : memref<56x32xf32, #tpu.memory_space<vmem>>, vector<1x32xf32>,
    %c55_i32 = arith.constant 55 : i32
    %331 = arith.addi %0, %c55_i32 : i32
    %332 = arith.index_cast %331 : i32 to index
    %333 = memref.load %arg1[%332] : memref<112xi32, #tpu.memory_space<smem>>
    %334 = arith.index_cast %333 : i32 to index
    %c0_110 = arith.constant 0 : index
    %335 = vector.load %arg2[%334, %c0_110] : memref<32x32xf32, #tpu.memory_space<vmem>>, vector<1x32xf32>
    %c55 = arith.constant 55 : index
    %c0_111 = arith.constant 0 : index
    %336 = vector.load %arg3[%c55, %c0_111] : memref<56x32xf32, #tpu.memory_space<vmem>>, vector<1x32xf32>
    tpu.vector_store %arg3[%c55, %c0_111], %335 {strides = array<i32>} : memref<56x32xf32, #tpu.memory_space<vmem>>, vector<1x32xf32>,
    return
  }
  func.func @transform_0(%arg0: i32, %arg1: memref<112xi32, #tpu.memory_space<smem>>) -> (i32, i32) {
    %c0_i32 = arith.constant 0 : i32
    %c0_i32_0 = arith.constant 0 : i32
    %c0_i32_1 = arith.constant 0 : i32
    return %c0_i32, %c0_i32_0 : i32, i32
  }
  func.func @transform_1(%arg0: i32, %arg1: memref<112xi32, #tpu.memory_space<smem>>) -> (i32, i32) {
    %c0_i32 = arith.constant 0 : i32
    %c0_i32_0 = arith.constant 0 : i32
    return %arg0, %c0_i32 : i32, i32
  }
}

</mosaic_0001>

<llo_original>
// kernel: tpu_custom_call.1
$region0: #{tpu_custom_call.1}
  #allocation0 [shape = 'u32[]', space=smem, size = 0x4, offset = 0x4, fixed_abs, tag = 'smem constant byte address 0x4 - core index']
  #allocation1 [shape = 'u32[72,128]{1,0:T(1,128)}', space=vmem, size = 0x9000, scoped, tag = 'internal scratch']
  #allocation2 [shape = 's32[1]{0}', space=sflag, size = 0x4, scoped, tag = 'scoped memory for tpu_custom_call.1']
  #allocation3 [shape = 'u8[512]{0}', space=smem, size = 0x200, scoped, tag = 'prefetched SMEM operand 0']
  %s0 = inlined_call_operand.hbm [shape: s32[112], index: 0, kind: input, shape index: {}]
  %s1 = inlined_call_operand.hbm [shape: f32[32,32], index: 1, kind: input, shape index: {}]
  %s2 = inlined_call_operand.vmem [shape: f32[112,32], index: 2, kind: output, shape index: {}]
  %s3 = sld [smem:[#allocation0]]
  $region41: #{tpu_custom_call.1} parent=0
    _
  %s5 = ssub.s32 1, %s3
  %s6 = scalar_select 0, %s5, %s3
  %s8 = sshll.u32 %s0, 4
  %s9 = int_to_ptr.hbm [resolvable:$true] %s8
  %11 = dma.hbm_to_smem %s9, 16, [#allocation3], [#allocation2]
  %13 = dma.done [#allocation2], 16
  %14 = sfence
  $region1: #{tpu_custom_call.1} parent=0
    #allocation4 [shape = 'u8[16384]{0}', space=vmem, size = 0x4000, scoped, tag = 'input window, operand 1, single buffered']
    #allocation5 [shape = 's32[2]{0}', space=sflag, size = 0x8, scoped, tag = 'scoped memory for tpu_custom_call.1']
    %15 = vsyncpa [#allocation5], 0
    loop: start=0, step=1, limit=4
    $region2: #{tpu_custom_call.1} parent=1 // loop_pre_header
      _
    $region3: #{tpu_custom_call.1} parent=1 // loop_header
      %s17 = sphi 0, %s21
      %p18 = scmp.ge.s32.totalorder %s17, 4
      %s25 = sphi 0, %s25
      %s27 = sphi 0, %s25
      %s28 = sphi 0, %s27
      %s42 = sphi 0, %s28
      %s48 = sphi 0, %s50
      %s51 = sphi 0, %s48
      %s52 = sphi 0, %s51
      %s68 = sphi 0, %s52
    $region4: #{tpu_custom_call.1} parent=1 // loop_header_branch
      %20 = sbr.rel (%p18) target = $region8
    $region5: #{tpu_custom_call.1} parent=1 // loop_body
      %s22 = ssub.s32 %s17, 1
      %s23 = ssub.s32 %s17, 2
      %s24 = sadd.s32 %s17, 1
      %s26 = sadd.s32 %s25, 1
      %p29 = scmp.eq.s32.totalorder %s17, 1
      %p30 = scmp.ne.s32.totalorder %s25, %s27
      %p31 = scmp.eq.s32.totalorder %s17, 0
      %p32 = por %p30, %p31
      %p33 = scmp.ne.s32.totalorder %s25, %s27
      %p34 = scmp.eq.s32.totalorder %s22, 1
      %p35 = por %p33, %p34
      %p36 = scmp.ne.s32.totalorder %s27, %s28
      %p37 = scmp.eq.s32.totalorder %s22, 0
      %p38 = por %p36, %p37
      %p39 = scmp.ne.s32.totalorder %s27, %s28
      %p40 = scmp.eq.s32.totalorder %s23, 1
      %p41 = por %p39, %p40
      %p43 = scmp.ne.s32.totalorder %s28, %s42
      %p44 = scmp.eq.s32.totalorder %s23, 0
      %p45 = por %p43, %p44
      %s46 = ssub.s32 %s17, %s24
      %p47 = scmp.eq.s32.totalorder %s46, 0
      %s49 = sadd.s32 %s48, 1
      %s50 = scalar_select %p47, %s48, %s49
      %p53 = pneg %p47
      %p54 = scmp.eq.s32.totalorder %s17, 1
      %p55 = por %p53, %p54
      %p56 = scmp.ne.s32.totalorder %s48, %s51
      %p57 = scmp.eq.s32.totalorder %s17, 0
      %p58 = por %p56, %p57
      %p59 = scmp.ne.s32.totalorder %s48, %s51
      %p60 = scmp.eq.s32.totalorder %s22, 1
      %p61 = por %p59, %p60
      %p62 = scmp.ne.s32.totalorder %s51, %s52
      %p63 = scmp.eq.s32.totalorder %s22, 0
      %p64 = por %p62, %p63
      %p65 = scmp.ne.s32.totalorder %s51, %s52
      %p66 = scmp.eq.s32.totalorder %s23, 1
      %p67 = por %p65, %p66
      %p69 = scmp.ne.s32.totalorder %s52, %s68
      %p70 = scmp.eq.s32.totalorder %s23, 0
      %p71 = por %p69, %p70
      %p72 = scmp.le.s32.totalorder 1, %s17
      %p73 = scmp.lt.s32.totalorder %s17, 3
      %p74 = pnand %p72, %p73
      %p75 = pneg %p74
      // Predicated region
      $region9: #{tpu_custom_call.1} parent=5 // pred_check
        _
      $region10: #{tpu_custom_call.1} parent=5 // pred_check_branch
        %77 = sbr.rel (%p74) target = $region12
      $region11: #{tpu_custom_call.1} parent=5 // pred_region
        %s78 = ssub.s32 %s17, 1
        // Predicated region
        $region13: #{tpu_custom_call.1} parent=11 // pred_check
          %p79 = pneg %p38
        $region14: #{tpu_custom_call.1} parent=11 // pred_check_branch
          %81 = sbr.rel (%p79) target = $region16
        $region15: #{tpu_custom_call.1} parent=11 // pred_region
          %83 = vsyncadd [#allocation5], 0
          %s84 = sshll.u32 %s1, 4
          %s85 = int_to_ptr.hbm [resolvable:$true] %s84
          %s86 = sshll.u32 [#allocation4], 4
          %s87 = int_to_ptr.vmem [resolvable:$true] %s86
          %92 = dma.hbm_to_vmem [thread:$0]  %s85, 512, %s87, [#allocation5], 128, 128, 8
        $region16: #{tpu_custom_call.1} parent=11 // pred_fallthru
          _
      $region12: #{tpu_custom_call.1} parent=5 // pred_fallthru
        _
      %p93 = scmp.lt.s32.totalorder %s17, 2
      // Predicated region
      $region17: #{tpu_custom_call.1} parent=5 // pred_check
        %p94 = pneg %p93
      $region18: #{tpu_custom_call.1} parent=5 // pred_check_branch
        %96 = sbr.rel (%p94) target = $region20
      $region19: #{tpu_custom_call.1} parent=5 // pred_region
        _
      $region20: #{tpu_custom_call.1} parent=5 // pred_fallthru
        _
      %p97 = scmp.le.s32.totalorder 1, %s17
      %p98 = scmp.lt.s32.totalorder %s17, 3
      %p99 = pnand %p97, %p98
      %p100 = pneg %p99
      // Predicated region
      $region21: #{tpu_custom_call.1} parent=5 // pred_check
        _
      $region22: #{tpu_custom_call.1} parent=5 // pred_check_branch
        %102 = sbr.rel (%p99) target = $region24
      $region23: #{tpu_custom_call.1} parent=5 // pred_region
        %s103 = ssub.s32 %s17, 1
        // Predicated region
        $region25: #{tpu_custom_call.1} parent=23 // pred_check
          %p104 = pneg %p38
        $region26: #{tpu_custom_call.1} parent=23 // pred_check_branch
          %106 = sbr.rel (%p104) target = $region28
        $region27: #{tpu_custom_call.1} parent=23 // pred_region
          %108 = dma.done [#allocation5], 512
        $region28: #{tpu_custom_call.1} parent=23 // pred_fallthru
          _
        %p109 = pneg %p38
        %p110 = pneg %p35
        %p111 = pneg %p64
        %p112 = pneg %p61
        %s113 = smul.u32 7, %s22
        %p114 = scmp.lt.s32.totalorder %s113, 13
        %s115 = scalar_select %p114, %s113, 13
        %s116 = smul.addr %s115, 8
        %s117 = scalar_lea.vmem %s2, %s116
        %s118 = smul.u32 7, %s22
        %p119 = scmp.lt.s32.totalorder %s118, 13
        %s120 = scalar_select %p119, %s118, 13
        %s121 = smul.addr %s120, 8
        %s122 = scalar_lea.vmem %s2, %s121
        %s123 = smul.u32 7, %s22
        %s124 = smul.u32 %s22, 56
        %s125 = sld [smem:[#allocation3 + %s124]]
        %s126 = scalar_lea.vmem [#allocation4], %s125
        %v127 = vld [vmem:[%s126] sm:$0x1]
        %vm128 = vcmask 253952
        %129 = vst.msk [vmem:[%s122] sm:$0x1] %vm128, %v127
        %s130 = sadd.s32 %s124, 1
        %s131 = sld [smem:[#allocation3 + %s130]]
        %s132 = scalar_lea.vmem [#allocation4], %s131
        %v133 = vld [vmem:[%s132] sm:$0x1]
        %134 = vst.msk [vmem:[%s122 + $0x1] sm:$0x1] %vm128, %v133
        %s135 = sadd.s32 %s124, 2
        %s136 = sld [smem:[#allocation3 + %s135]]
        %s137 = scalar_lea.vmem [#allocation4], %s136
        %v138 = vld [vmem:[%s137] sm:$0x1]
        %139 = vst.msk [vmem:[%s122 + $0x2] sm:$0x1] %vm128, %v138
        %s140 = sadd.s32 %s124, 3
        %s141 = sld [smem:[#allocation3 + %s140]]
        %s142 = scalar_lea.vmem [#allocation4], %s141
        %v143 = vld [vmem:[%s142] sm:$0x1]
        %144 = vst.msk [vmem:[%s122 + $0x3] sm:$0x1] %vm128, %v143
        %s145 = sadd.s32 %s124, 4
        %s146 = sld [smem:[#allocation3 + %s145]]
        %s147 = scalar_lea.vmem [#allocation4], %s146
        %v148 = vld [vmem:[%s147] sm:$0x1]
        %149 = vst.msk [vmem:[%s122 + $0x4] sm:$0x1] %vm128, %v148
        %s150 = sadd.s32 %s124, 5
        %s151 = sld [smem:[#allocation3 + %s150]]
        %s152 = scalar_lea.vmem [#allocation4], %s151
        %v153 = vld [vmem:[%s152] sm:$0x1]
        %154 = vst.msk [vmem:[%s122 + $0x5] sm:$0x1] %vm128, %v153
        %s155 = sadd.s32 %s124, 6
        %s156 = sld [smem:[#allocation3 + %s155]]
        %s157 = scalar_lea.vmem [#allocation4], %s156
        %v158 = vld [vmem:[%s157] sm:$0x1]
        %159 = vst.msk [vmem:[%s122 + $0x6] sm:$0x1] %vm128, %v158
        %s160 = sadd.s32 %s124, 7
        %s161 = sld [smem:[#allocation3 + %s160]]
        %s162 = scalar_lea.vmem [#allocation4], %s161
        %v163 = vld [vmem:[%s162] sm:$0x1]
        %164 = vst.msk [vmem:[%s122 + $0x7] sm:$0x1] %vm128, %v163
        %s165 = sadd.s32 %s124, 8
        %s166 = sld [smem:[#allocation3 + %s165]]
        %s167 = scalar_lea.vmem [#allocation4], %s166
        %v168 = vld [vmem:[%s167] sm:$0x1]
        %169 = vst.msk [vmem:[%s122 + $0x8] sm:$0x1] %vm128, %v168
        %s170 = sadd.s32 %s124, 9
        %s171 = sld [smem:[#allocation3 + %s170]]
        %s172 = scalar_lea.vmem [#allocation4], %s171
        %v173 = vld [vmem:[%s172] sm:$0x1]
        %174 = vst.msk [vmem:[%s122 + $0x9] sm:$0x1] %vm128, %v173
        %s175 = sadd.s32 %s124, 10
        %s176 = sld [smem:[#allocation3 + %s175]]
        %s177 = scalar_lea.vmem [#allocation4], %s176
        %v178 = vld [vmem:[%s177] sm:$0x1]
        %179 = vst.msk [vmem:[%s122 + $0xa] sm:$0x1] %vm128, %v178
        %s180 = sadd.s32 %s124, 11
        %s181 = sld [smem:[#allocation3 + %s180]]
        %s182 = scalar_lea.vmem [#allocation4], %s181
        %v183 = vld [vmem:[%s182] sm:$0x1]
        %184 = vst.msk [vmem:[%s122 + $0xb] sm:$0x1] %vm128, %v183
        %s185 = sadd.s32 %s124, 12
        %s186 = sld [smem:[#allocation3 + %s185]]
        %s187 = scalar_lea.vmem [#allocation4], %s186
        %v188 = vld [vmem:[%s187] sm:$0x1]
        %189 = vst.msk [vmem:[%s122 + $0xc] sm:$0x1] %vm128, %v188
        %s190 = sadd.s32 %s124, 13
        %s191 = sld [smem:[#allocation3 + %s190]]
        %s192 = scalar_lea.vmem [#allocation4], %s191
        %v193 = vld [vmem:[%s192] sm:$0x1]
        %194 = vst.msk [vmem:[%s122 + $0xd] sm:$0x1] %vm128, %v193
        %s195 = sadd.s32 %s124, 14
        %s196 = sld [smem:[#allocation3 + %s195]]
        %s197 = scalar_lea.vmem [#allocation4], %s196
        %v198 = vld [vmem:[%s197] sm:$0x1]
        %199 = vst.msk [vmem:[%s122 + $0xe] sm:$0x1] %vm128, %v198
        %s200 = sadd.s32 %s124, 15
        %s201 = sld [smem:[#allocation3 + %s200]]
        %s202 = scalar_lea.vmem [#allocation4], %s201
        %v203 = vld [vmem:[%s202] sm:$0x1]
        %204 = vst.msk [vmem:[%s122 + $0xf] sm:$0x1] %vm128, %v203
        %s205 = sadd.s32 %s124, 16
        %s206 = sld [smem:[#allocation3 + %s205]]
        %s207 = scalar_lea.vmem [#allocation4], %s206
        %v208 = vld [vmem:[%s207] sm:$0x1]
        %209 = vst.msk [vmem:[%s122 + $0x10] sm:$0x1] %vm128, %v208
        %s210 = sadd.s32 %s124, 17
        %s211 = sld [smem:[#allocation3 + %s210]]
        %s212 = scalar_lea.vmem [#allocation4], %s211
        %v213 = vld [vmem:[%s212] sm:$0x1]
        %214 = vst.msk [vmem:[%s122 + $0x11] sm:$0x1] %vm128, %v213
        %s215 = sadd.s32 %s124, 18
        %s216 = sld [smem:[#allocation3 + %s215]]
        %s217 = scalar_lea.vmem [#allocation4], %s216
        %v218 = vld [vmem:[%s217] sm:$0x1]
        %219 = vst.msk [vmem:[%s122 + $0x12] sm:$0x1] %vm128, %v218
        %s220 = sadd.s32 %s124, 19
        %s221 = sld [smem:[#allocation3 + %s220]]
        %s222 = scalar_lea.vmem [#allocation4], %s221
        %v223 = vld [vmem:[%s222] sm:$0x1]
        %224 = vst.msk [vmem:[%s122 + $0x13] sm:$0x1] %vm128, %v223
        %s225 = sadd.s32 %s124, 20
        %s226 = sld [smem:[#allocation3 + %s225]]
        %s227 = scalar_lea.vmem [#allocation4], %s226
        %v228 = vld [vmem:[%s227] sm:$0x1]
        %229 = vst.msk [vmem:[%s122 + $0x14] sm:$0x1] %vm128, %v228
        %s230 = sadd.s32 %s124, 21
        %s231 = sld [smem:[#allocation3 + %s230]]
        %s232 = scalar_lea.vmem [#allocation4], %s231
        %v233 = vld [vmem:[%s232] sm:$0x1]
        %234 = vst.msk [vmem:[%s122 + $0x15] sm:$0x1] %vm128, %v233
        %s235 = sadd.s32 %s124, 22
        %s236 = sld [smem:[#allocation3 + %s235]]
        %s237 = scalar_lea.vmem [#allocation4], %s236
        %v238 = vld [vmem:[%s237] sm:$0x1]
        %239 = vst.msk [vmem:[%s122 + $0x16] sm:$0x1] %vm128, %v238
        %s240 = sadd.s32 %s124, 23
        %s241 = sld [smem:[#allocation3 + %s240]]
        %s242 = scalar_lea.vmem [#allocation4], %s241
        %v243 = vld [vmem:[%s242] sm:$0x1]
        %244 = vst.msk [vmem:[%s122 + $0x17] sm:$0x1] %vm128, %v243
        %s245 = sadd.s32 %s124, 24
        %s246 = sld [smem:[#allocation3 + %s245]]
        %s247 = scalar_lea.vmem [#allocation4], %s246
        %v248 = vld [vmem:[%s247] sm:$0x1]
        %249 = vst.msk [vmem:[%s122 + $0x18] sm:$0x1] %vm128, %v248
        %s250 = sadd.s32 %s124, 25
        %s251 = sld [smem:[#allocation3 + %s250]]
        %s252 = scalar_lea.vmem [#allocation4], %s251
        %v253 = vld [vmem:[%s252] sm:$0x1]
        %254 = vst.msk [vmem:[%s122 + $0x19] sm:$0x1] %vm128, %v253
        %s255 = sadd.s32 %s124, 26
        %s256 = sld [smem:[#allocation3 + %s255]]
        %s257 = scalar_lea.vmem [#allocation4], %s256
        %v258 = vld [vmem:[%s257] sm:$0x1]
        %259 = vst.msk [vmem:[%s122 + $0x1a] sm:$0x1] %vm128, %v258
        %s260 = sadd.s32 %s124, 27
        %s261 = sld [smem:[#allocation3 + %s260]]
        %s262 = scalar_lea.vmem [#allocation4], %s261
        %v263 = vld [vmem:[%s262] sm:$0x1]
        %264 = vst.msk [vmem:[%s122 + $0x1b] sm:$0x1] %vm128, %v263
        %s265 = sadd.s32 %s124, 28
        %s266 = sld [smem:[#allocation3 + %s265]]
        %s267 = scalar_lea.vmem [#allocation4], %s266
        %v268 = vld [vmem:[%s267] sm:$0x1]
        %269 = vst.msk [vmem:[%s122 + $0x1c] sm:$0x1] %vm128, %v268
        %s270 = sadd.s32 %s124, 29
        %s271 = sld [smem:[#allocation3 + %s270]]
        %s272 = scalar_lea.vmem [#allocation4], %s271
        %v273 = vld [vmem:[%s272] sm:$0x1]
        %274 = vst.msk [vmem:[%s122 + $0x1d] sm:$0x1] %vm128, %v273
        %s275 = sadd.s32 %s124, 30
        %s276 = sld [smem:[#allocation3 + %s275]]
        %s277 = scalar_lea.vmem [#allocation4], %s276
        %v278 = vld [vmem:[%s277] sm:$0x1]
        %279 = vst.msk [vmem:[%s122 + $0x1e] sm:$0x1] %vm128, %v278
        %s280 = sadd.s32 %s124, 31
        %s281 = sld [smem:[#allocation3 + %s280]]
        %s282 = scalar_lea.vmem [#allocation4], %s281
        %v283 = vld [vmem:[%s282] sm:$0x1]
        %284 = vst.msk [vmem:[%s122 + $0x1f] sm:$0x1] %vm128, %v283
        %s285 = sadd.s32 %s124, 32
        %s286 = sld [smem:[#allocation3 + %s285]]
        %s287 = scalar_lea.vmem [#allocation4], %s286
        %v288 = vld [vmem:[%s287] sm:$0x1]
        %289 = vst.msk [vmem:[%s122 + $0x20] sm:$0x1] %vm128, %v288
        %s290 = sadd.s32 %s124, 33
        %s291 = sld [smem:[#allocation3 + %s290]]
        %s292 = scalar_lea.vmem [#allocation4], %s291
        %v293 = vld [vmem:[%s292] sm:$0x1]
        %294 = vst.msk [vmem:[%s122 + $0x21] sm:$0x1] %vm128, %v293
        %s295 = sadd.s32 %s124, 34
        %s296 = sld [smem:[#allocation3 + %s295]]
        %s297 = scalar_lea.vmem [#allocation4], %s296
        %v298 = vld [vmem:[%s297] sm:$0x1]
        %299 = vst.msk [vmem:[%s122 + $0x22] sm:$0x1] %vm128, %v298
        %s300 = sadd.s32 %s124, 35
        %s301 = sld [smem:[#allocation3 + %s300]]
        %s302 = scalar_lea.vmem [#allocation4], %s301
        %v303 = vld [vmem:[%s302] sm:$0x1]
        %304 = vst.msk [vmem:[%s122 + $0x23] sm:$0x1] %vm128, %v303
        %s305 = sadd.s32 %s124, 36
        %s306 = sld [smem:[#allocation3 + %s305]]
        %s307 = scalar_lea.vmem [#allocation4], %s306
        %v308 = vld [vmem:[%s307] sm:$0x1]
        %309 = vst.msk [vmem:[%s122 + $0x24] sm:$0x1] %vm128, %v308
        %s310 = sadd.s32 %s124, 37
        %s311 = sld [smem:[#allocation3 + %s310]]
        %s312 = scalar_lea.vmem [#allocation4], %s311
        %v313 = vld [vmem:[%s312] sm:$0x1]
        %314 = vst.msk [vmem:[%s122 + $0x25] sm:$0x1] %vm128, %v313
        %s315 = sadd.s32 %s124, 38
        %s316 = sld [smem:[#allocation3 + %s315]]
        %s317 = scalar_lea.vmem [#allocation4], %s316
        %v318 = vld [vmem:[%s317] sm:$0x1]
        %319 = vst.msk [vmem:[%s122 + $0x26] sm:$0x1] %vm128, %v318
        %s320 = sadd.s32 %s124, 39
        %s321 = sld [smem:[#allocation3 + %s320]]
        %s322 = scalar_lea.vmem [#allocation4], %s321
        %v323 = vld [vmem:[%s322] sm:$0x1]
        %324 = vst.msk [vmem:[%s122 + $0x27] sm:$0x1] %vm128, %v323
        %s325 = sadd.s32 %s124, 40
        %s326 = sld [smem:[#allocation3 + %s325]]
        %s327 = scalar_lea.vmem [#allocation4], %s326
        %v328 = vld [vmem:[%s327] sm:$0x1]
        %329 = vst.msk [vmem:[%s122 + $0x28] sm:$0x1] %vm128, %v328
        %s330 = sadd.s32 %s124, 41
        %s331 = sld [smem:[#allocation3 + %s330]]
        %s332 = scalar_lea.vmem [#allocation4], %s331
        %v333 = vld [vmem:[%s332] sm:$0x1]
        %334 = vst.msk [vmem:[%s122 + $0x29] sm:$0x1] %vm128, %v333
        %s335 = sadd.s32 %s124, 42
        %s336 = sld [smem:[#allocation3 + %s335]]
        %s337 = scalar_lea.vmem [#allocation4], %s336
        %v338 = vld [vmem:[%s337] sm:$0x1]
        %339 = vst.msk [vmem:[%s122 + $0x2a] sm:$0x1] %vm128, %v338
        %s340 = sadd.s32 %s124, 43
        %s341 = sld [smem:[#allocation3 + %s340]]
        %s342 = scalar_lea.vmem [#allocation4], %s341
        %v343 = vld [vmem:[%s342] sm:$0x1]
        %344 = vst.msk [vmem:[%s122 + $0x2b] sm:$0x1] %vm128, %v343
        %s345 = sadd.s32 %s124, 44
        %s346 = sld [smem:[#allocation3 + %s345]]
        %s347 = scalar_lea.vmem [#allocation4], %s346
        %v348 = vld [vmem:[%s347] sm:$0x1]
        %349 = vst.msk [vmem:[%s122 + $0x2c] sm:$0x1] %vm128, %v348
        %s350 = sadd.s32 %s124, 45
        %s351 = sld [smem:[#allocation3 + %s350]]
        %s352 = scalar_lea.vmem [#allocation4], %s351
        %v353 = vld [vmem:[%s352] sm:$0x1]
        %354 = vst.msk [vmem:[%s122 + $0x2d] sm:$0x1] %vm128, %v353
        %s355 = sadd.s32 %s124, 46
        %s356 = sld [smem:[#allocation3 + %s355]]
        %s357 = scalar_lea.vmem [#allocation4], %s356
        %v358 = vld [vmem:[%s357] sm:$0x1]
        %359 = vst.msk [vmem:[%s122 + $0x2e] sm:$0x1] %vm128, %v358
        %s360 = sadd.s32 %s124, 47
        %s361 = sld [smem:[#allocation3 + %s360]]
        %s362 = scalar_lea.vmem [#allocation4], %s361
        %v363 = vld [vmem:[%s362] sm:$0x1]
        %364 = vst.msk [vmem:[%s122 + $0x2f] sm:$0x1] %vm128, %v363
        %s365 = sadd.s32 %s124, 48
        %s366 = sld [smem:[#allocation3 + %s365]]
        %s367 = scalar_lea.vmem [#allocation4], %s366
        %v368 = vld [vmem:[%s367] sm:$0x1]
        %369 = vst.msk [vmem:[%s122 + $0x30] sm:$0x1] %vm128, %v368
        %s370 = sadd.s32 %s124, 49
        %s371 = sld [smem:[#allocation3 + %s370]]
        %s372 = scalar_lea.vmem [#allocation4], %s371
        %v373 = vld [vmem:[%s372] sm:$0x1]
        %374 = vst.msk [vmem:[%s122 + $0x31] sm:$0x1] %vm128, %v373
        %s375 = sadd.s32 %s124, 50
        %s376 = sld [smem:[#allocation3 + %s375]]
        %s377 = scalar_lea.vmem [#allocation4], %s376
        %v378 = vld [vmem:[%s377] sm:$0x1]
        %379 = vst.msk [vmem:[%s122 + $0x32] sm:$0x1] %vm128, %v378
        %s380 = sadd.s32 %s124, 51
        %s381 = sld [smem:[#allocation3 + %s380]]
        %s382 = scalar_lea.vmem [#allocation4], %s381
        %v383 = vld [vmem:[%s382] sm:$0x1]
        %384 = vst.msk [vmem:[%s122 + $0x33] sm:$0x1] %vm128, %v383
        %s385 = sadd.s32 %s124, 52
        %s386 = sld [smem:[#allocation3 + %s385]]
        %s387 = scalar_lea.vmem [#allocation4], %s386
        %v388 = vld [vmem:[%s387] sm:$0x1]
        %389 = vst.msk [vmem:[%s122 + $0x34] sm:$0x1] %vm128, %v388
        %s390 = sadd.s32 %s124, 53
        %s391 = sld [smem:[#allocation3 + %s390]]
        %s392 = scalar_lea.vmem [#allocation4], %s391
        %v393 = vld [vmem:[%s392] sm:$0x1]
        %394 = vst.msk [vmem:[%s122 + $0x35] sm:$0x1] %vm128, %v393
        %s395 = sadd.s32 %s124, 54
        %s396 = sld [smem:[#allocation3 + %s395]]
        %s397 = scalar_lea.vmem [#allocation4], %s396
        %v398 = vld [vmem:[%s397] sm:$0x1]
        %399 = vst.msk [vmem:[%s122 + $0x36] sm:$0x1] %vm128, %v398
        %s400 = sadd.s32 %s124, 55
        %s401 = sld [smem:[#allocation3 + %s400]]
        %s402 = scalar_lea.vmem [#allocation4], %s401
        %v403 = vld [vmem:[%s402] sm:$0x1]
        %404 = vst.msk [vmem:[%s122 + $0x37] sm:$0x1] %vm128, %v403
        %s405 = smul.u32 7, %s22
        %p406 = scmp.lt.s32.totalorder %s405, 13
        %s407 = scalar_select %p406, %s405, 13
        %s408 = smul.addr %s407, 8
        %s409 = scalar_lea.vmem %s2, %s408
        // Predicated region
        $region29: #{tpu_custom_call.1} parent=23 // pred_check
          %p410 = pneg %p61
        $region30: #{tpu_custom_call.1} parent=23 // pred_check_branch
          %412 = sbr.rel (%p410) target = $region32
        $region31: #{tpu_custom_call.1} parent=23 // pred_region
          %s413 = smul.u32 7, %s22
        $region32: #{tpu_custom_call.1} parent=23 // pred_fallthru
          _
      $region24: #{tpu_custom_call.1} parent=5 // pred_fallthru
        _
      %p414 = scmp.le.s32.totalorder 2, %s17
      // Predicated region
      $region33: #{tpu_custom_call.1} parent=5 // pred_check
        %p415 = pneg %p414
      $region34: #{tpu_custom_call.1} parent=5 // pred_check_branch
        %417 = sbr.rel (%p415) target = $region36
      $region35: #{tpu_custom_call.1} parent=5 // pred_region
        %s418 = ssub.s32 %s17, 2
        // Predicated region
        $region37: #{tpu_custom_call.1} parent=35 // pred_check
          %p419 = pneg %p67
        $region38: #{tpu_custom_call.1} parent=35 // pred_check_branch
          %421 = sbr.rel (%p419) target = $region40
        $region39: #{tpu_custom_call.1} parent=35 // pred_region
          %s422 = smul.u32 7, %s23
          %p423 = scmp.lt.s32.totalorder %s422, 13
          %s424 = scalar_select %p423, %s422, 13
          %s425 = smul.addr %s424, 8
          %s426 = scalar_lea.vmem %s2, %s425
        $region40: #{tpu_custom_call.1} parent=35 // pred_fallthru
          _
      $region36: #{tpu_custom_call.1} parent=5 // pred_fallthru
        _
    $region6: #{tpu_custom_call.1} parent=1 // loop_footer
      %s21 = sadd.s32 1, %s17
    $region7: #{tpu_custom_call.1} parent=1 // loop_footer_branch
      %16 = sbr.rel target = $region3
    $region8: #{tpu_custom_call.1} parent=1 // loop_exit
      _
    %427 = vsyncpa [#allocation5], 1
    %s428 = scalar_lea.sflag [#allocation5], 1
    %429 = vsyncpa %s428, 1

</llo_original>
